<compile_context>
chip_gen: v7x
topology: tpu7x:2x2x1
jax: 0.10.0
libtpu: 0.0.40
codegen_flags: <defaults>
</compile_context>

<pallas_src>
import numpy as np
import jax
import jax.numpy as jnp
from jax.experimental import pallas as pl
from jax.experimental.pallas import tpu as pltpu

KERNEL_SIZES = (3, 5, 7)
N_BRANCH = len(KERNEL_SIZES)
MAX_K = max(KERNEL_SIZES)            # 7 taps along N
PAD = MAX_K // 2                     # 3


def _round_up(x, m):
    return (x + m - 1) // m * m


def _cdiv(a, b):
    return -(-a // b)


def _arch_params():
    """(row-tile cap, vmem_limit_bytes) per TPU generation."""
    cap = 64 << 20
    try:
        cap = int(pltpu.get_tpu_info().vmem_capacity_bytes)
    except Exception:
        pass
    if cap <= (64 << 20):            # v7x-class: small VMEM -> leave headroom
        return 512, 48 * 1024 * 1024
    return 1024, 96 * 1024 * 1024    # v5e / v6e: bigger tiles, bigger budget


# --------------------------------------------------------------------------- #
# Kernels
# --------------------------------------------------------------------------- #
def _make_fused_kernel(transpose_out):
    """Single-dot path: LHS = tap-concatenated activations (K = 7*C_in),
    RHS = per-batch selection-folded weights."""

    def kernel(x_ref, w_ref, b_ref, out_ref):
        # x_ref : (1, TN, 7*C_in)   bf16
        # w_ref : (1, 7*C_in, C_out) bf16
        # b_ref : (1, 1, C_out)      f32
        # out_ref: (1, C_out, TN) or (1, TN, C_out) f32
        acc = jnp.dot(x_ref[0], w_ref[0], preferred_element_type=jnp.float32)
        acc = acc + b_ref[0]
        if transpose_out:
            acc = acc.T                       # XLU transpose; store stays lane-dense
        out_ref[0] = acc.astype(out_ref.dtype)

    return kernel


def _make_tap_kernel(tn, transpose_out):
    """7-tap path for large C_in (where the im2col LHS would out-traffic the
    output).  Taps are loaded straight from the padded-activation ref (no
    materialized window, no relayout slices); weights are selection-folded so
    the accumulator is only C_out wide."""

    def kernel(xp_ref, w_ref, b_ref, out_ref):
        # xp_ref: (1, R, C_in) bf16 | w_ref: (1, 7, C_in, C_out) bf16
        # b_ref : (1, 1, C_out) f32 | out_ref as above
        row0 = pl.multiple_of(pl.program_id(1) * tn, 8)
        acc = None
        for d in range(MAX_K):
            tap = xp_ref[0, pl.ds(row0 + d, tn), :]               # (TN, C_in) bf16
            part = jnp.dot(tap, w_ref[0, d],
                           preferred_element_type=jnp.float32)    # (TN, C_out) f32
            acc = part if acc is None else acc + part
        acc = acc + b_ref[0]
        if transpose_out:
            acc = acc.T
        out_ref[0] = acc.astype(out_ref.dtype)

    return kernel


# --------------------------------------------------------------------------- #
# Forward wrapper
# --------------------------------------------------------------------------- #
def selective_kernel_forward(x, packed_params, row_tile_cap=None):
    """x: (B, C_in, N, 1) float32 NCHW (the module's .view() requires W == 1).
    Returns (B, C_out, N) float32, matching the nn.Module."""
    w_taps, b_all, wfc_t, bfc = packed_params          # all f32
    B, c_in, N, W = x.shape
    assert W == 1, "module's .view() requires x.size(3) == 1"
    c_out = w_taps.shape[-1] // N_BRANCH

    row_tile_max, vmem_limit = _arch_params()
    if row_tile_cap is not None:
        row_tile_max = row_tile_cap

    # In-kernel transposed store needs a 128-multiple N tile so the (C_out, TN)
    # stores stay lane-dense; otherwise store channels-last and transpose after.
    transpose_out = (c_out % 128 == 0)
    align = 128 if transpose_out else 8
    tn = _round_up(min(row_tile_max, _round_up(N, align)), align)
    num_nt = _cdiv(N, tn)
    n_blk = num_nt * tn
    R = n_blk + 8                       # padded rows: every tap window in-bounds

    # Channels-last activations, bf16 once in the wrapper (halves activation DMA),
    # zero-padded along N (3 left, rest right).
    xt = jnp.transpose(x[:, :, :, 0], (0, 2, 1))                    # (B, N, C_in) f32
    xp = jnp.pad(xt.astype(jnp.bfloat16),
                 ((0, 0), (PAD, R - PAD - N), (0, 0)))              # (B, R, C_in) bf16

    # ---- tiny prologue: per-batch selection weights (exact by linearity:
    # mean_n conv_k(x) == conv_k applied to per-tap means).  One pass over x
    # plus <=3 head/tail edge-row corrections per tap (not 7 windowed means).
    full = jnp.sum(xt, axis=1)                                      # (B, C_in)
    if N >= PAD:
        tap_sums = []
        for d in range(MAX_K):
            s = full
            if d < PAD:                                             # drop last PAD-d rows
                s = s - jnp.sum(xt[:, N - (PAD - d):, :], axis=1)
            elif d > PAD:                                           # drop first d-PAD rows
                s = s - jnp.sum(xt[:, :d - PAD, :], axis=1)
            tap_sums.append(s)
        tap_means = jnp.stack(tap_sums, axis=1) / N                 # (B, 7, C_in)
    else:                                # tiny-N fallback: direct windowed means
        xpf = jnp.pad(xt, ((0, 0), (PAD, PAD), (0, 0)))
        tap_means = jnp.stack([jnp.mean(xpf[:, d:d + N, :], axis=1)
                               for d in range(MAX_K)], axis=1)

    w_all = w_taps.reshape(MAX_K * c_in, N_BRANCH * c_out)
    pooled = jnp.dot(tap_means.reshape(B, MAX_K * c_in), w_all,
                     precision=jax.lax.Precision.HIGHEST) + b_all   # (B, 3*C_out)
    wsel = jnp.dot(pooled, wfc_t,
                   precision=jax.lax.Precision.HIGHEST) + bfc       # (B, 3)

    # ---- fold selection weights & biases into the conv weights (per batch):
    # sum_k wsel[k] * conv_k(x)  ==  conv with W_eff = sum_k wsel[k] * W_k.
    w_branch = w_taps.reshape(MAX_K, c_in, N_BRANCH, c_out)
    w_eff = jnp.einsum("bk,dikc->bdic", wsel, w_branch,
                       precision=jax.lax.Precision.HIGHEST)         # (B,7,C_in,C_out) f32
    w_eff = w_eff.astype(jnp.bfloat16)
    b_eff = jnp.dot(wsel, b_all.reshape(N_BRANCH, c_out),
                    precision=jax.lax.Precision.HIGHEST)[:, None, :]  # (B,1,C_out) f32

    if transpose_out:
        out_shape = jax.ShapeDtypeStruct((B, c_out, n_blk), jnp.float32)
        out_spec = pl.BlockSpec((1, c_out, tn), lambda b, t: (b, 0, t))
    else:
        out_shape = jax.ShapeDtypeStruct((B, n_blk, c_out), jnp.float32)
        out_spec = pl.BlockSpec((1, tn, c_out), lambda b, t: (b, t, 0))

    # Single fused dot (K = 7*C_in) whenever the tap-concatenated bf16 rows are
    # no wider in bytes than the f32 output rows; otherwise 7 per-tap dots.
    use_fused = (MAX_K * c_in * 2 <= c_out * 4)

    if use_fused:
        x_taps = jnp.concatenate([xp[:, d:d + n_blk, :] for d in range(MAX_K)],
                                 axis=-1)                           # (B, n_blk, 7*C_in) bf16
        w_flat = w_eff.reshape(B, MAX_K * c_in, c_out)
        kernel = _make_fused_kernel(transpose_out)
        in_specs = [
            pl.BlockSpec((1, tn, MAX_K * c_in), lambda b, t: (b, t, 0)),
            pl.BlockSpec((1, MAX_K * c_in, c_out), lambda b, t: (b, 0, 0)),
            pl.BlockSpec((1, 1, c_out), lambda b, t: (b, 0, 0)),
        ]
        operands = (x_taps, w_flat, b_eff)
    else:
        # TODO(synk): for very large N*C_in on v7x, replace this whole-batch xp
        # block with manual (tn+8, C_in) halo windows via pltpu.make_async_copy.
        kernel = _make_tap_kernel(tn, transpose_out)
        in_specs = [
            pl.BlockSpec((1, R, c_in), lambda b, t: (b, 0, 0)),
            pl.BlockSpec((1, MAX_K, c_in, c_out), lambda b, t: (b, 0, 0, 0)),
            pl.BlockSpec((1, 1, c_out), lambda b, t: (b, 0, 0)),
        ]
        operands = (xp, w_eff, b_eff)

    out = pl.pallas_call(
        kernel,
        out_shape=out_shape,
        grid_spec=pltpu.PrefetchScalarGridSpec(
            num_scalar_prefetch=0,
            grid=(B, num_nt),
            in_specs=in_specs,
            out_specs=out_spec),
        compiler_params=pltpu.CompilerParams(
            dimension_semantics=("parallel", "parallel"),
            vmem_limit_bytes=vmem_limit),
    )(*operands)

    if transpose_out:
        return out[:, :, :N] if n_blk > N else out
    out = out[:, :N, :] if n_blk > N else out
    return jnp.transpose(out, (0, 2, 1))


# --------------------------------------------------------------------------- #
# Params: torch-style init, tap-major packing, pure-JAX reference
# --------------------------------------------------------------------------- #
def init_params(key, c_in, c_out):
    """Deterministic torch-style uniform init; shapes match the nn.Module."""
    ks = KERNEL_SIZES
    keys = jax.random.split(key, 2 * len(ks) + 2)
    conv_ws, conv_bs = [], []
    for i, k in enumerate(ks):
        bound = 1.0 / np.sqrt(c_in * k * k)
        conv_ws.append(jax.random.uniform(keys[2 * i], (c_out, c_in, k, k),
                                          jnp.float32, -bound, bound))
        conv_bs.append(jax.random.uniform(keys[2 * i + 1], (c_out,),
                                          jnp.float32, -bound, bound))
    bound = 1.0 / np.sqrt(len(ks) * c_out)
    fc_w = jax.random.uniform(keys[-2], (len(ks), len(ks) * c_out),
                              jnp.float32, -bound, bound)
    fc_b = jax.random.uniform(keys[-1], (len(ks),), jnp.float32, -bound, bound)
    return conv_ws, conv_bs, fc_w, fc_b


def pack_params(conv_ws, conv_bs, fc_w, fc_b, c_in, c_out):
    """Pack torch-shaped params into the fused tap-major weights the kernel uses."""
    w_taps = np.zeros((MAX_K, c_in, N_BRANCH * c_out), np.float32)  # [tap, C_in, 3*C_out]
    for k_idx, k in enumerate(KERNEL_SIZES):
        p = (k - 1) // 2
        # Only the center column (kw == p) ever touches real data (W == 1).
        wc = np.asarray(conv_ws[k_idx])[:, :, :, p]                 # (C_out, C_in, k)
        for j in range(k):
            d = j + (PAD - p)                                       # tap index in [0, 7)
            w_taps[d, :, k_idx * c_out:(k_idx + 1) * c_out] = wc[:, :, j].T
    b_all = np.concatenate([np.asarray(b) for b in conv_bs]).reshape(1, N_BRANCH * c_out)
    wfc_t = np.asarray(fc_w).T.astype(np.float32)                   # (3*C_out, 3)
    bfc = np.asarray(fc_b).reshape(1, N_BRANCH).astype(np.float32)
    return (jnp.asarray(w_taps), jnp.asarray(b_all),
            jnp.asarray(wfc_t), jnp.asarray(bfc))


def reference_forward(x, conv_ws, conv_bs, fc_w, fc_b):
    """Pure-JAX replica of the PyTorch forward (for correctness check)."""
    B, c_in, N, W = x.shape
    c_out = conv_ws[0].shape[0]
    outs = []
    for k_idx, k in enumerate(KERNEL_SIZES):
        p = (k - 1) // 2
        o = jax.lax.conv_general_dilated(
            x, conv_ws[k_idx], window_strides=(1, 1),
            padding=((p, p), (p, p)),
            dimension_numbers=("NCHW", "OIHW", "NCHW"),
            precision=jax.lax.Precision.HIGHEST)
        outs.append(o + conv_bs[k_idx][None, :, None, None])        # (B, C_out, N, 1)
    concat = jnp.concatenate(outs, axis=1).mean(axis=(-1, -2))      # (B, 3*C_out)
    weight = jnp.dot(concat, fc_w.T,
                     precision=jax.lax.Precision.HIGHEST) + fc_b    # (B, 3)
    stacked = jnp.stack(outs, axis=1).reshape(B, N_BRANCH, c_out, N)
    return (stacked * weight[:, :, None, None]).sum(axis=1)         # (B, C_out, N)


# --------------------------------------------------------------------------- #
if __name__ == "__main__":
    def _run_case(key, B, c_in, N, c_out, row_tile_cap=None):
        kx, kp = jax.random.split(key)
        x = jax.random.normal(kx, (B, c_in, N, 1), jnp.float32)
        conv_ws, conv_bs, fc_w, fc_b = init_params(kp, c_in, c_out)
        packed = pack_params(conv_ws, conv_bs, fc_w, fc_b, c_in, c_out)
        out = jax.block_until_ready(
            selective_kernel_forward(x, packed, row_tile_cap=row_tile_cap))
        assert out.shape == (B, c_out, N)
        ref = jax.block_until_ready(
            reference_forward(x, conv_ws, conv_bs, fc_w, fc_b))
        np.testing.assert_allclose(np.asarray(out), np.asarray(ref),
                                   rtol=2e-2, atol=2e-2)

    k0, k1 = jax.random.split(jax.random.PRNGKey(0))
    # Fused single-dot path (small C_in), single N tile, in-kernel transpose.
    _run_case(k0, B=2, c_in=4, N=16, c_out=128)
    # Same path with a multi-tile N grid and N not a multiple of the tile.
    _run_case(k1, B=2, c_in=16, N=200, c_out=256, row_tile_cap=128)
    print("KERNEL_OK")
</pallas_src>

<mosaic_0001>
module attributes {stable_mosaic.version = 11 : i64} {
  func.func @kernel(%arg0: i32, %arg1: i32, %arg2: memref<1x128x28xbf16, #tpu.memory_space<vmem>>, %arg3: memref<1x28x128xbf16, #tpu.memory_space<vmem>>, %arg4: memref<1x1x128xf32, #tpu.memory_space<vmem>>, %arg5: memref<1x128x128xf32, #tpu.memory_space<vmem>>) attributes {dimension_semantics = [#tpu.dimension_semantics<parallel>, #tpu.dimension_semantics<parallel>], iteration_bounds = array<i64: 2, 1>, scalar_prefetch = 0 : i64, scratch_operands = 0 : i64, tpu.core_type = #tpu.core_type<tc>, window_params = [{transform_indices = @transform_0, window_bounds = array<i64: 1, 128, 28>}, {transform_indices = @transform_1, window_bounds = array<i64: 1, 28, 128>}, {transform_indices = @transform_2, window_bounds = array<i64: 1, 1, 128>}, {transform_indices = @transform_3, window_bounds = array<i64: 1, 128, 128>}]} {
    %c0 = arith.constant 0 : index
    %c0_0 = arith.constant 0 : index
    %c0_1 = arith.constant 0 : index
    %0 = vector.load %arg2[%c0, %c0_0, %c0_1] : memref<1x128x28xbf16, #tpu.memory_space<vmem>>, vector<1x128x28xbf16>
    %1 = vector.shape_cast %0 : vector<1x128x28xbf16> to vector<128x28xbf16>
    %c0_2 = arith.constant 0 : index
    %c0_3 = arith.constant 0 : index
    %c0_4 = arith.constant 0 : index
    %2 = vector.load %arg3[%c0_2, %c0_3, %c0_4] : memref<1x28x128xbf16, #tpu.memory_space<vmem>>, vector<1x28x128xbf16>
    %3 = vector.shape_cast %2 : vector<1x28x128xbf16> to vector<28x128xbf16>
    %cst = arith.constant dense<0.000000e+00> : vector<128x128xf32>
    %4 = tpu.matmul %1, %3, %cst {dimension_numbers = #tpu.dot_dimension_numbers<[1], [0], [0], [1], [0, 0, 1, 1], [], []>} : vector<128x28xbf16>, vector<28x128xbf16>, vector<128x128xf32> -> vector<128x128xf32>
    %c0_5 = arith.constant 0 : index
    %c0_6 = arith.constant 0 : index
    %c0_7 = arith.constant 0 : index
    %5 = vector.load %arg4[%c0_5, %c0_6, %c0_7] : memref<1x1x128xf32, #tpu.memory_space<vmem>>, vector<1x1x128xf32>
    %6 = vector.shape_cast %5 : vector<1x1x128xf32> to vector<1x128xf32>
    %7 = vector.broadcast %6 : vector<1x128xf32> to vector<128x128xf32>
    %8 = arith.addf %4, %7 : vector<128x128xf32>
    %9 = tpu.transpose %8, [1, 0] : vector<128x128xf32> -> vector<128x128xf32>
    %c0_8 = arith.constant 0 : index
    %c0_9 = arith.constant 0 : index
    %c0_10 = arith.constant 0 : index
    %10 = vector.load %arg5[%c0_8, %c0_9, %c0_10] : memref<1x128x128xf32, #tpu.memory_space<vmem>>, vector<1x128x128xf32>
    %11 = vector.shape_cast %10 : vector<1x128x128xf32> to vector<128x128xf32>
    %12 = vector.shape_cast %9 : vector<128x128xf32> to vector<1x128x128xf32>
    tpu.vector_store %arg5[%c0_8, %c0_9, %c0_10], %12 {strides = array<i32>} : memref<1x128x128xf32, #tpu.memory_space<vmem>>, vector<1x128x128xf32>,
    return
  }
  func.func @transform_0(%arg0: i32, %arg1: i32) -> (i32, i32, i32) {
    %c0_i32 = arith.constant 0 : i32
    %c0_i32_0 = arith.constant 0 : i32
    return %arg0, %arg1, %c0_i32 : i32, i32, i32
  }
  func.func @transform_1(%arg0: i32, %arg1: i32) -> (i32, i32, i32) {
    %c0_i32 = arith.constant 0 : i32
    %c0_i32_0 = arith.constant 0 : i32
    %c0_i32_1 = arith.constant 0 : i32
    return %arg0, %c0_i32, %c0_i32_0 : i32, i32, i32
  }
  func.func @transform_2(%arg0: i32, %arg1: i32) -> (i32, i32, i32) {
    %c0_i32 = arith.constant 0 : i32
    %c0_i32_0 = arith.constant 0 : i32
    %c0_i32_1 = arith.constant 0 : i32
    return %arg0, %c0_i32, %c0_i32_0 : i32, i32, i32
  }
  func.func @transform_3(%arg0: i32, %arg1: i32) -> (i32, i32, i32) {
    %c0_i32 = arith.constant 0 : i32
    %c0_i32_0 = arith.constant 0 : i32
    return %arg0, %c0_i32, %arg1 : i32, i32, i32
  }
}

</mosaic_0001>

<llo_original>
// kernel: tpu_custom_call.1
$region0: #{tpu_custom_call.1}
  #allocation0 [shape = 'u32[]', space=smem, size = 0x4, offset = 0x4, fixed_abs, tag = 'smem constant byte address 0x4 - core index']
  #allocation1 [shape = 'u32[144,128]{1,0:T(1,128)}', space=vmem, size = 0x12000, scoped, tag = 'internal scratch']
  %s0 = inlined_call_operand.vmem [shape: bf16[2,128,28], index: 0, kind: input, shape index: {}]
  %s1 = inlined_call_operand.vmem [shape: bf16[2,28,128], index: 1, kind: input, shape index: {}]
  %s2 = inlined_call_operand.vmem [shape: f32[2,1,128], index: 2, kind: input, shape index: {}]
  %s3 = inlined_call_operand.hbm [shape: f32[2,128,128], index: 3, kind: output, shape index: {}]
  %s4 = sld [smem:[#allocation0]]
  $region45: #{tpu_custom_call.1} parent=0
    _
  %s6 = ssub.s32 1, %s4
  %s7 = scalar_select 0, %s6, %s4
  $region1: #{tpu_custom_call.1} parent=0
    #allocation2 [shape = 'u8[131072]{0}', space=vmem, size = 0x20000, scoped, tag = 'output window, operand 0']
    #allocation3 [shape = 's32[2]{0}', space=sflag, size = 0x8, scoped, tag = 'scoped memory for tpu_custom_call.1']
    %8 = vsyncpa [#allocation3], 0
    %s9 = scalar_lea.sflag [#allocation3], 1
    %10 = vsyncpa %s9, 0
    loop: start=0, step=1, limit=4
    $region2: #{tpu_custom_call.1} parent=1 // loop_pre_header
      _
    $region3: #{tpu_custom_call.1} parent=1 // loop_header
      %s12 = sphi 0, %s16
      %p13 = scmp.ge.s32.totalorder %s12, 4
      %s19 = sphi 0, %s31
      %s20 = sphi 0, %s27
      %s21 = sphi 0, %s19
      %s22 = sphi 0, %s20
      %s23 = sphi 0, %s21
      %s24 = sphi 0, %s22
      %s36 = sphi 0, %s38
      %s39 = sphi 0, %s36
      %s40 = sphi 0, %s39
      %s56 = sphi 0, %s40
      %s62 = sphi 0, %s64
      %s65 = sphi 0, %s62
      %s66 = sphi 0, %s65
      %s82 = sphi 0, %s66
      %s88 = sphi 0, %s90
      %s91 = sphi 0, %s88
      %s92 = sphi 0, %s91
      %s108 = sphi 0, %s92
      %s116 = sphi 0, %s118
      %s119 = sphi 0, %s116
      %s120 = sphi 0, %s119
      %s136 = sphi 0, %s120
    $region4: #{tpu_custom_call.1} parent=1 // loop_header_branch
      %15 = sbr.rel (%p13) target = $region8
    $region5: #{tpu_custom_call.1} parent=1 // loop_body
      %s17 = ssub.s32 %s12, 1
      %s18 = ssub.s32 %s12, 2
      %s25 = sadd.s32 1, %s20
      %p26 = scmp.ge.s32.totalorder %s25, 1
      %s27 = scalar_select %p26, 0, %s25
      %s28 = sadd.s32 1, %s19
      %s29 = scalar_select %p26, %s28, %s19
      %p30 = scmp.ge.s32.totalorder %s29, 2
      %s31 = scalar_select %p30, 0, %s29
      %s32 = ssub.s32 %s19, %s31
      %s33 = ssub.s32 %s20, %s27
      %s34 = sor.u32 %s32, %s33
      %p35 = scmp.eq.s32.totalorder %s34, 0
      %s37 = sadd.s32 %s36, 1
      %s38 = scalar_select %p35, %s36, %s37
      %p41 = pneg %p35
      %p42 = scmp.eq.s32.totalorder %s12, 1
      %p43 = por %p41, %p42
      %p44 = scmp.ne.s32.totalorder %s36, %s39
      %p45 = scmp.eq.s32.totalorder %s12, 0
      %p46 = por %p44, %p45
      %p47 = scmp.ne.s32.totalorder %s36, %s39
      %p48 = scmp.eq.s32.totalorder %s17, 1
      %p49 = por %p47, %p48
      %p50 = scmp.ne.s32.totalorder %s39, %s40
      %p51 = scmp.eq.s32.totalorder %s17, 0
      %p52 = por %p50, %p51
      %p53 = scmp.ne.s32.totalorder %s39, %s40
      %p54 = scmp.eq.s32.totalorder %s18, 1
      %p55 = por %p53, %p54
      %p57 = scmp.ne.s32.totalorder %s40, %s56
      %p58 = scmp.eq.s32.totalorder %s18, 0
      %p59 = por %p57, %p58
      %s60 = ssub.s32 %s19, %s31
      %p61 = scmp.eq.s32.totalorder %s60, 0
      %s63 = sadd.s32 %s62, 1
      %s64 = scalar_select %p61, %s62, %s63
      %p67 = pneg %p61
      %p68 = scmp.eq.s32.totalorder %s12, 1
      %p69 = por %p67, %p68
      %p70 = scmp.ne.s32.totalorder %s62, %s65
      %p71 = scmp.eq.s32.totalorder %s12, 0
      %p72 = por %p70, %p71
      %p73 = scmp.ne.s32.totalorder %s62, %s65
      %p74 = scmp.eq.s32.totalorder %s17, 1
      %p75 = por %p73, %p74
      %p76 = scmp.ne.s32.totalorder %s65, %s66
      %p77 = scmp.eq.s32.totalorder %s17, 0
      %p78 = por %p76, %p77
      %p79 = scmp.ne.s32.totalorder %s65, %s66
      %p80 = scmp.eq.s32.totalorder %s18, 1
      %p81 = por %p79, %p80
      %p83 = scmp.ne.s32.totalorder %s66, %s82
      %p84 = scmp.eq.s32.totalorder %s18, 0
      %p85 = por %p83, %p84
      %s86 = ssub.s32 %s19, %s31
      %p87 = scmp.eq.s32.totalorder %s86, 0
      %s89 = sadd.s32 %s88, 1
      %s90 = scalar_select %p87, %s88, %s89
      %p93 = pneg %p87
      %p94 = scmp.eq.s32.totalorder %s12, 1
      %p95 = por %p93, %p94
      %p96 = scmp.ne.s32.totalorder %s88, %s91
      %p97 = scmp.eq.s32.totalorder %s12, 0
      %p98 = por %p96, %p97
      %p99 = scmp.ne.s32.totalorder %s88, %s91
      %p100 = scmp.eq.s32.totalorder %s17, 1
      %p101 = por %p99, %p100
      %p102 = scmp.ne.s32.totalorder %s91, %s92
      %p103 = scmp.eq.s32.totalorder %s17, 0
      %p104 = por %p102, %p103
      %p105 = scmp.ne.s32.totalorder %s91, %s92
      %p106 = scmp.eq.s32.totalorder %s18, 1
      %p107 = por %p105, %p106
      %p109 = scmp.ne.s32.totalorder %s92, %s108
      %p110 = scmp.eq.s32.totalorder %s18, 0
      %p111 = por %p109, %p110
      %s112 = ssub.s32 %s19, %s31
      %s113 = ssub.s32 %s20, %s27
      %s114 = sor.u32 %s112, %s113
      %p115 = scmp.eq.s32.totalorder %s114, 0
      %s117 = sadd.s32 %s116, 1
      %s118 = scalar_select %p115, %s116, %s117
      %p121 = pneg %p115
      %p122 = scmp.eq.s32.totalorder %s12, 1
      %p123 = por %p121, %p122
      %p124 = scmp.ne.s32.totalorder %s116, %s119
      %p125 = scmp.eq.s32.totalorder %s12, 0
      %p126 = por %p124, %p125
      %p127 = scmp.ne.s32.totalorder %s116, %s119
      %p128 = scmp.eq.s32.totalorder %s17, 1
      %p129 = por %p127, %p128
      %p130 = scmp.ne.s32.totalorder %s119, %s120
      %p131 = scmp.eq.s32.totalorder %s17, 0
      %p132 = por %p130, %p131
      %p133 = scmp.ne.s32.totalorder %s119, %s120
      %p134 = scmp.eq.s32.totalorder %s18, 1
      %p135 = por %p133, %p134
      %p137 = scmp.ne.s32.totalorder %s120, %s136
      %p138 = scmp.eq.s32.totalorder %s18, 0
      %p139 = por %p137, %p138
      %p140 = scmp.le.s32.totalorder 1, %s12
      %p141 = scmp.lt.s32.totalorder %s12, 3
      %p142 = pnand %p140, %p141
      %p143 = pneg %p142
      // Predicated region
      $region9: #{tpu_custom_call.1} parent=5 // pred_check
        _
      $region10: #{tpu_custom_call.1} parent=5 // pred_check_branch
        %145 = sbr.rel (%p142) target = $region12
      $region11: #{tpu_custom_call.1} parent=5 // pred_region
        %s146 = ssub.s32 %s12, 1
      $region12: #{tpu_custom_call.1} parent=5 // pred_fallthru
        _
      %p147 = scmp.lt.s32.totalorder %s12, 2
      // Predicated region
      $region13: #{tpu_custom_call.1} parent=5 // pred_check
        %p148 = pneg %p147
      $region14: #{tpu_custom_call.1} parent=5 // pred_check_branch
        %150 = sbr.rel (%p148) target = $region16
      $region15: #{tpu_custom_call.1} parent=5 // pred_region
        // Predicated region
        $region17: #{tpu_custom_call.1} parent=15 // pred_check
          %p151 = pneg %p46
        $region18: #{tpu_custom_call.1} parent=15 // pred_check_branch
          %153 = sbr.rel (%p151) target = $region20
        $region19: #{tpu_custom_call.1} parent=15 // pred_region
          %s154 = smul.u32 16, %s20
          %p155 = scmp.lt.s32.totalorder %s19, 1
          %s156 = scalar_select %p155, %s19, 1
          %p157 = scmp.lt.s32.totalorder %s154, 15
          %s158 = scalar_select %p157, %s154, 15
          %s159 = smul.addr %s156, 16
          %s160 = sadd.s32 %s158, %s159
          %s161 = smul.addr %s160, 4
          %s162 = scalar_lea.vmem %s0, %s161
          %s163 = smul.u32 16, %s20
        $region20: #{tpu_custom_call.1} parent=15 // pred_fallthru
          _
        // Predicated region
        $region21: #{tpu_custom_call.1} parent=15 // pred_check
          %p164 = pneg %p72
        $region22: #{tpu_custom_call.1} parent=15 // pred_check_branch
          %166 = sbr.rel (%p164) target = $region24
        $region23: #{tpu_custom_call.1} parent=15 // pred_region
          %p167 = scmp.lt.s32.totalorder %s19, 1
          %s168 = scalar_select %p167, %s19, 1
          %s169 = smul.addr %s168, 4
          %s170 = smul.addr %s169, 4
          %s171 = scalar_lea.vmem %s1, %s170
        $region24: #{tpu_custom_call.1} parent=15 // pred_fallthru
          _
        // Predicated region
        $region25: #{tpu_custom_call.1} parent=15 // pred_check
          %p172 = pneg %p98
        $region26: #{tpu_custom_call.1} parent=15 // pred_check_branch
          %174 = sbr.rel (%p172) target = $region28
        $region27: #{tpu_custom_call.1} parent=15 // pred_region
          %p175 = scmp.lt.s32.totalorder %s19, 1
          %s176 = scalar_select %p175, %s19, 1
          %s177 = scalar_lea.vmem %s2, %s176
        $region28: #{tpu_custom_call.1} parent=15 // pred_fallthru
          _
      $region16: #{tpu_custom_call.1} parent=5 // pred_fallthru
        _
      %p178 = scmp.le.s32.totalorder 1, %s12
      %p179 = scmp.lt.s32.totalorder %s12, 3
      %p180 = pnand %p178, %p179
      %p181 = pneg %p180
      // Predicated region
      $region29: #{tpu_custom_call.1} parent=5 // pred_check
        _
      $region30: #{tpu_custom_call.1} parent=5 // pred_check_branch
        %183 = sbr.rel (%p180) target = $region32
      $region31: #{tpu_custom_call.1} parent=5 // pred_region
        %s184 = ssub.s32 %s12, 1
        %s185 = smul.u32 16, %s22
        %p186 = scmp.lt.s32.totalorder %s21, 1
        %s187 = scalar_select %p186, %s21, 1
        %p188 = scmp.lt.s32.totalorder %s185, 15
        %s189 = scalar_select %p188, %s185, 15
        %s190 = smul.addr %s187, 16
        %s191 = sadd.s32 %s189, %s190
        %s192 = smul.addr %s191, 4
        %s193 = scalar_lea.vmem %s0, %s192
        %p194 = pneg %p52
        %p195 = pneg %p49
        %p196 = scmp.lt.s32.totalorder %s21, 1
        %s197 = scalar_select %p196, %s21, 1
        %s198 = smul.addr %s197, 4
        %s199 = smul.addr %s198, 4
        %s200 = scalar_lea.vmem %s1, %s199
        %p201 = pneg %p78
        %p202 = pneg %p75
        %p203 = scmp.lt.s32.totalorder %s21, 1
        %s204 = scalar_select %p203, %s21, 1
        %s205 = scalar_lea.vmem %s2, %s204
        %p206 = pneg %p104
        %p207 = pneg %p101
        %p208 = pneg %p132
        %p209 = pneg %p129
        %s210 = sand.u32 %s119, 1
        %s211 = scalar_lea.sflag [#allocation3], %s210
        %s212 = sand.u32 %s119, 1
        %s213 = smul.addr %s212, 128
        %s214 = scalar_lea.vmem [#allocation2], %s213
        %s215 = smul.u32 16, %s22
        %p216 = scmp.lt.s32.totalorder %s21, 1
        %s217 = scalar_select %p216, %s21, 1
        %p218 = scmp.lt.s32.totalorder %s215, 15
        %s219 = scalar_select %p218, %s215, 15
        %s220 = smul.addr %s217, 16
        %s221 = sadd.s32 %s219, %s220
        %s222 = smul.addr %s221, 4
        %s223 = scalar_lea.vmem %s0, %s222
        %s224 = smul.u32 16, %s22
        %p225 = scmp.lt.s32.totalorder %s21, 1
        %s226 = scalar_select %p225, %s21, 1
        %s227 = smul.addr %s226, 4
        %s228 = smul.addr %s227, 4
        %s229 = scalar_lea.vmem %s1, %s228
        %p230 = scmp.lt.s32.totalorder %s21, 1
        %s231 = scalar_select %p230, %s21, 1
        %s232 = scalar_lea.vmem %s2, %s231
        %v234 = vld [vmem:[%s223] sm:$0xf]
        %v235 = vld [vmem:[%s223 + $0x4] sm:$0xf]
        %v236 = vld [vmem:[%s223 + $0x8] sm:$0xf]
        %v237 = vld [vmem:[%s223 + $0xc] sm:$0xf]
        %v238 = vld [vmem:[%s223 + $0x10] sm:$0xf]
        %v239 = vld [vmem:[%s223 + $0x14] sm:$0xf]
        %v240 = vld [vmem:[%s223 + $0x18] sm:$0xf]
        %v241 = vld [vmem:[%s223 + $0x1c] sm:$0xf]
        %v242 = vld [vmem:[%s223 + $0x20] sm:$0xf]
        %v243 = vld [vmem:[%s223 + $0x24] sm:$0xf]
        %v244 = vld [vmem:[%s223 + $0x28] sm:$0xf]
        %v245 = vld [vmem:[%s223 + $0x2c] sm:$0xf]
        %v246 = vld [vmem:[%s223 + $0x30] sm:$0xf]
        %v247 = vld [vmem:[%s223 + $0x34] sm:$0xf]
        %v248 = vld [vmem:[%s223 + $0x38] sm:$0xf]
        %v249 = vld [vmem:[%s223 + $0x3c] sm:$0xf]
        %v250 = vld [vmem:[%s229] sm:$0xf]
        %v251 = vld [vmem:[%s229 + $0x4] sm:$0xf]
        %v252 = vld [vmem:[%s229 + $0x8] sm:$0xf]
        %v253 = vld [vmem:[%s229 + $0xc] sm:$0x3]
        %v254 = vld [vmem:[%s232] sm:$0x1]
        %v256 = vlaneseq
        %v257 = vshrl.u32 %v256, 7
        %v258 = vsub.s32 0, %v257
        %v259 = vrot.slane %v254, %v258
        %v277 = vunpack.c.l.b16 %v234
        %v278 = vunpack.c.l.b16 %v235
        %v279 = vunpack.c.l.b16 %v236
        %v280 = vunpack.c.l.b16 %v237
        %v281 = vunpack.c.l.b16 %v238
        %v282 = vunpack.c.l.b16 %v239
        %v283 = vunpack.c.l.b16 %v240
        %v284 = vunpack.c.l.b16 %v241
        %v285 = vunpack.c.l.b16 %v242
        %v286 = vunpack.c.l.b16 %v243
        %v287 = vunpack.c.l.b16 %v244
        %v288 = vunpack.c.l.b16 %v245
        %v289 = vunpack.c.l.b16 %v246
        %v290 = vunpack.c.l.b16 %v247
        %v291 = vunpack.c.l.b16 %v248
        %v292 = vunpack.c.l.b16 %v249
        %v293 = vpack.c.b16 %v278, %v277
        %v294 = vpack.c.b16 %v280, %v279
        %v295 = vpack.c.b16 %v282, %v281
        %v296 = vpack.c.b16 %v284, %v283
        %v297 = vpack.c.b16 %v286, %v285
        %v298 = vpack.c.b16 %v288, %v287
        %v299 = vpack.c.b16 %v290, %v289
        %v300 = vpack.c.b16 %v292, %v291
        %v305 = vunpack.c.l.b16 %v250
        %v306 = vunpack.c.l.b16 %v251
        %v307 = vunpack.c.l.b16 %v252
        %v308 = vunpack.c.l.b16 %v253
        %v309 = vpack.c.b16 %v306, %v305
        %v310 = vpack.c.b16 %v308, %v307
        %vm312 = vcmask 228352
        %v314 = vsel %vm312, %v293, 0
        %v317 = vsel %vm312, %v294, 0
        %v320 = vsel %vm312, %v295, 0
        %v323 = vsel %vm312, %v296, 0
        %v326 = vsel %vm312, %v297, 0
        %v329 = vsel %vm312, %v298, 0
        %v332 = vsel %vm312, %v299, 0
        %v335 = vsel %vm312, %v300, 0
        %vm337 = vcmask 1045504
        %v339 = vsel %vm337, %v310, 0
        %341 = vmatprep.subr.bf16.mxu0 0
        %342 = vmatpush1.bf16.msra.mxu0 %v309
        %343 = vmatprep.subr.bf16.mxu0 0
        %344 = vmatpush1.bf16.msra.mxu0 %v339
        %345 = vmatprep.subr.bf16.mxu0 0
        %346 = vmatpush1.bf16.msra.mxu0 0
        %347 = vmatprep.subr.bf16.mxu0 0
        %348 = vmatpush1.bf16.msra.mxu0 0
        %349 = vmatprep.subr.bf16.mxu0 0
        %350 = vmatpush1.bf16.msra.mxu0 0
        %351 = vmatprep.subr.bf16.mxu0 0
        %352 = vmatpush1.bf16.msra.mxu0 0
        %353 = vmatprep.subr.bf16.mxu0 0
        %354 = vmatpush1.bf16.msra.mxu0 0
        %355 = vmatprep.subr.bf16.mxu0 0
        %356 = vmatpush1.bf16.msra.mxu0 0
        %357 = vmatprep.subr.bf16.mxu0 0
        %358 = vmatpush1.bf16.msra.mxu0 0
        %359 = vmatprep.subr.bf16.mxu0 0
        %360 = vmatpush1.bf16.msra.mxu0 0
        %361 = vmatprep.subr.bf16.mxu0 0
        %362 = vmatpush1.bf16.msra.mxu0 0
        %363 = vmatprep.subr.bf16.mxu0 0
        %364 = vmatpush1.bf16.msra.mxu0 0
        %365 = vmatprep.subr.bf16.mxu0 0
        %366 = vmatpush1.bf16.msra.mxu0 0
        %367 = vmatprep.subr.bf16.mxu0 0
        %368 = vmatpush1.bf16.msra.mxu0 0
        %369 = vmatprep.subr.bf16.mxu0 0
        %370 = vmatpush1.bf16.msra.mxu0 0
        %371 = vmatprep.subr.bf16.mxu0 0
        %372 = vmatpush1.bf16.msra.mxu0 0
        %373 = vmatprep.mubr.bf16.mxu0 0
        %374 = vmatmul.mubr.bf16.gmra.mrb[0].mxu0 %v314
        %v375 = vpop.f32.mrb[0].mxu0
        %v376 = vadd.f32 %v259, %v375
        %v377 = vpop.f32.mrb[0].mxu0
        %v378 = vpop.f32.mrb[0].mxu0
        %v379 = vadd.f32 %v259, %v378
        %v380 = vpop.f32.mrb[0].mxu0
        %381 = vmatprep.mubr.bf16.mxu0 0
        %382 = vmatmul.mubr.bf16.gmra.mrb[0].mxu0 %v317
        %v383 = vpop.f32.mrb[0].mxu0
        %v384 = vadd.f32 %v259, %v383
        %v385 = vpop.f32.mrb[0].mxu0
        %v386 = vpop.f32.mrb[0].mxu0
        %v387 = vadd.f32 %v259, %v386
        %v388 = vpop.f32.mrb[0].mxu0
        %389 = vmatprep.mubr.bf16.mxu0 0
        %390 = vmatmul.mubr.bf16.gmra.mrb[0].mxu0 %v320
        %v391 = vpop.f32.mrb[0].mxu0
        %v392 = vadd.f32 %v259, %v391
        %v393 = vpop.f32.mrb[0].mxu0
        %v394 = vpop.f32.mrb[0].mxu0
        %v395 = vadd.f32 %v259, %v394
        %v396 = vpop.f32.mrb[0].mxu0
        %397 = vmatprep.mubr.bf16.mxu0 0
        %398 = vmatmul.mubr.bf16.gmra.mrb[0].mxu0 %v323
        %v399 = vpop.f32.mrb[0].mxu0
        %v400 = vadd.f32 %v259, %v399
        %v401 = vpop.f32.mrb[0].mxu0
        %v402 = vpop.f32.mrb[0].mxu0
        %v403 = vadd.f32 %v259, %v402
        %v404 = vpop.f32.mrb[0].mxu0
        %405 = vmatprep.mubr.bf16.mxu0 0
        %406 = vmatmul.mubr.bf16.gmra.mrb[0].mxu0 %v326
        %v407 = vpop.f32.mrb[0].mxu0
        %v408 = vadd.f32 %v259, %v407
        %v409 = vpop.f32.mrb[0].mxu0
        %v410 = vpop.f32.mrb[0].mxu0
        %v411 = vadd.f32 %v259, %v410
        %v412 = vpop.f32.mrb[0].mxu0
        %413 = vmatprep.mubr.bf16.mxu0 0
        %414 = vmatmul.mubr.bf16.gmra.mrb[0].mxu0 %v329
        %v415 = vpop.f32.mrb[0].mxu0
        %v416 = vadd.f32 %v259, %v415
        %v417 = vpop.f32.mrb[0].mxu0
        %v418 = vpop.f32.mrb[0].mxu0
        %v419 = vadd.f32 %v259, %v418
        %v420 = vpop.f32.mrb[0].mxu0
        %421 = vmatprep.mubr.bf16.mxu0 0
        %422 = vmatmul.mubr.bf16.gmra.mrb[0].mxu0 %v332
        %v423 = vpop.f32.mrb[0].mxu0
        %v424 = vadd.f32 %v259, %v423
        %v425 = vpop.f32.mrb[0].mxu0
        %v426 = vpop.f32.mrb[0].mxu0
        %v427 = vadd.f32 %v259, %v426
        %v428 = vpop.f32.mrb[0].mxu0
        %429 = vmatprep.mubr.bf16.mxu0 0
        %430 = vmatmul.mubr.bf16.gmra.mrb[0].mxu0 %v335
        %v431 = vpop.f32.mrb[0].mxu0
        %v432 = vadd.f32 %v259, %v431
        %v433 = vpop.f32.mrb[0].mxu0
        %v434 = vpop.f32.mrb[0].mxu0
        %v435 = vadd.f32 %v259, %v434
        %v436 = vpop.f32.mrb[0].mxu0
        %437 = vdwg.mxu0
        %438 = vxpose.xlu0.b32.start [1/16] %v376, 128
        %439 = vxpose.xlu0.b32.cont [2/16] %v379, 128
        %440 = vxpose.xlu0.b32.cont [3/16] %v384, 128
        %441 = vxpose.xlu0.b32.cont [4/16] %v387, 128
        %442 = vxpose.xlu0.b32.cont [5/16] %v392, 128
        %443 = vxpose.xlu0.b32.cont [6/16] %v395, 128
        %444 = vxpose.xlu0.b32.cont [7/16] %v400, 128
        %445 = vxpose.xlu0.b32.cont [8/16] %v403, 128
        %446 = vxpose.xlu0.b32.cont [9/16] %v408, 128
        %447 = vxpose.xlu0.b32.cont [10/16] %v411, 128
        %448 = vxpose.xlu0.b32.cont [11/16] %v416, 128
        %449 = vxpose.xlu0.b32.cont [12/16] %v419, 128
        %450 = vxpose.xlu0.b32.cont [13/16] %v424, 128
        %451 = vxpose.xlu0.b32.cont [14/16] %v427, 128
        %452 = vxpose.xlu0.b32.cont [15/16] %v432, 128
        %453 = vxpose.xlu0.b32.end [16/16] %v435, 128
        %v454 = vpop.trf.xlu0
        %v455 = vpop.trf.xlu0
        %v456 = vpop.trf.xlu0
        %v457 = vpop.trf.xlu0
        %v458 = vpop.trf.xlu0
        %v459 = vpop.trf.xlu0
        %v460 = vpop.trf.xlu0
        %v461 = vpop.trf.xlu0
        %v462 = vpop.trf.xlu0
        %v463 = vpop.trf.xlu0
        %v464 = vpop.trf.xlu0
        %v465 = vpop.trf.xlu0
        %v466 = vpop.trf.xlu0
        %v467 = vpop.trf.xlu0
        %v468 = vpop.trf.xlu0
        %v469 = vpop.trf.xlu0
        %470 = vst [vmem:[%s214] sm:$0xff] %v454
        %471 = vst [vmem:[%s214 + $0x8] sm:$0xff] %v455
        %472 = vst [vmem:[%s214 + $0x10] sm:$0xff] %v456
        %473 = vst [vmem:[%s214 + $0x18] sm:$0xff] %v457
        %474 = vst [vmem:[%s214 + $0x20] sm:$0xff] %v458
        %475 = vst [vmem:[%s214 + $0x28] sm:$0xff] %v459
        %476 = vst [vmem:[%s214 + $0x30] sm:$0xff] %v460
        %477 = vst [vmem:[%s214 + $0x38] sm:$0xff] %v461
        %478 = vst [vmem:[%s214 + $0x40] sm:$0xff] %v462
        %479 = vst [vmem:[%s214 + $0x48] sm:$0xff] %v463
        %480 = vst [vmem:[%s214 + $0x50] sm:$0xff] %v464
        %481 = vst [vmem:[%s214 + $0x58] sm:$0xff] %v465
        %482 = vst [vmem:[%s214 + $0x60] sm:$0xff] %v466
        %483 = vst [vmem:[%s214 + $0x68] sm:$0xff] %v467
        %484 = vst [vmem:[%s214 + $0x70] sm:$0xff] %v468
        %485 = vst [vmem:[%s214 + $0x78] sm:$0xff] %v469
        %s486 = sand.u32 %s119, 1
        %s487 = scalar_lea.sflag [#allocation3], %s486
        %s488 = sand.u32 %s119, 1
        %s489 = smul.addr %s488, 128
        %s490 = scalar_lea.vmem [#allocation2], %s489
        // Predicated region
        $region33: #{tpu_custom_call.1} parent=31 // pred_check
          %p491 = pneg %p129
        $region34: #{tpu_custom_call.1} parent=31 // pred_check_branch
          %493 = sbr.rel (%p491) target = $region36
        $region35: #{tpu_custom_call.1} parent=31 // pred_region
          %s495 = ssub.s32 2048, 2048
          %496 = vsyncadd %s487, %s495
          %s497 = smul.addr %s21, 16
          %s498 = sadd.s32 %s22, %s497
          %s499 = smul.addr %s498, 128
          %s500 = scalar_lea.hbm %s3, %s499
          %s501 = sshll.u32 %s490, 4
          %s502 = int_to_ptr.vmem [resolvable:$true] %s501
          %507 = dma.vmem_to_hbm [thread:$0]  %s502, 2048, %s500, %s487, 128, 128, 8
        $region36: #{tpu_custom_call.1} parent=31 // pred_fallthru
          _
      $region32: #{tpu_custom_call.1} parent=5 // pred_fallthru
        _
      %p508 = scmp.le.s32.totalorder 2, %s12
      // Predicated region
      $region37: #{tpu_custom_call.1} parent=5 // pred_check
        %p509 = pneg %p508
      $region38: #{tpu_custom_call.1} parent=5 // pred_check_branch
        %511 = sbr.rel (%p509) target = $region40
      $region39: #{tpu_custom_call.1} parent=5 // pred_region
        %s512 = ssub.s32 %s12, 2
        // Predicated region
        $region41: #{tpu_custom_call.1} parent=39 // pred_check
          %p513 = pneg %p135
        $region42: #{tpu_custom_call.1} parent=39 // pred_check_branch
          %515 = sbr.rel (%p513) target = $region44
        $region43: #{tpu_custom_call.1} parent=39 // pred_region
          %s516 = sand.u32 %s120, 1
          %s517 = scalar_lea.sflag [#allocation3], %s516
          %s518 = sand.u32 %s120, 1
          %s519 = smul.addr %s518, 128
          %s520 = scalar_lea.vmem [#allocation2], %s519
          %521 = dma.done %s517, 2048
        $region44: #{tpu_custom_call.1} parent=39 // pred_fallthru
          _
      $region40: #{tpu_custom_call.1} parent=5 // pred_fallthru
        _
    $region6: #{tpu_custom_call.1} parent=1 // loop_footer
      %s16 = sadd.s32 1, %s12
    $region7: #{tpu_custom_call.1} parent=1 // loop_footer_branch
      %11 = sbr.rel target = $region3
    $region8: #{tpu_custom_call.1} parent=1 // loop_exit
      _
    %522 = vsyncpa [#allocation3], 1
    %s523 = scalar_lea.sflag [#allocation3], 1
    %524 = vsyncpa %s523, 1

</llo_original>
